<compile_context>
chip_gen: v6e
topology: v6e:2x2x1
jax: 0.10.0
libtpu: 0.0.40
codegen_flags: <defaults>
</compile_context>

<pallas_src>
import functools
import math

import jax
import jax.numpy as jnp
from jax.experimental import pallas as pl
from jax.experimental.pallas import tpu as pltpu


IN_DIM, H1, H2, H3, OUT_DIM = 7, 25, 25, 10, 3
LANE = 128


def _round_up(x, m):
    return (x + m - 1) // m * m


def _mlp_kernel(x_ref,
                w1_ref, b1_ref,
                w2_ref, b2_ref,
                w3_ref, b3_ref,
                w4_ref, b4_ref,
                o_ref):
    # x_ref: (7, tb) bf16 tile (batch on lanes). Weights (out, in) bf16, biases (out, 1) f32.
    x = x_ref[...]

    z1 = jnp.dot(w1_ref[...], x, preferred_element_type=jnp.float32) + b1_ref[...]
    a1 = jnp.maximum(z1, 0.0).astype(w2_ref.dtype)          # ReLU in f32, cast for MXU

    z2 = jnp.dot(w2_ref[...], a1, preferred_element_type=jnp.float32) + b2_ref[...]
    a2 = jnp.maximum(z2, 0.0).astype(w3_ref.dtype)

    z3 = jnp.dot(w3_ref[...], a2, preferred_element_type=jnp.float32) + b3_ref[...]
    a3 = jnp.maximum(z3, 0.0).astype(w4_ref.dtype)

    z4 = jnp.dot(w4_ref[...], a3, preferred_element_type=jnp.float32) + b4_ref[...]
    o_ref[...] = z4.astype(o_ref.dtype)                     # (3, tb), lane-dense store


def _pick_tile(bp, tile_b):
    """Pick a 128-multiple batch tile; prefer >=2 grid steps for v7x megacore sharding."""
    tile_b = _round_up(max(tile_b, LANE), LANE)
    if bp <= tile_b:
        if bp >= 2 * LANE:
            return _round_up(-(-bp // 2), LANE)              # split a single-tile batch in 2
        return bp
    return tile_b


@functools.partial(jax.jit, static_argnames=("tile_b", "out_dtype"))
def second_net_forward_fm(x_fm, params, tile_b=8192, out_dtype=jnp.float32):
    """Preferred entry point (no wrapper HBM transposes).

    x_fm: (7, B) feature-major input (any float dtype; cast to bf16).
    Returns (3, B) in `out_dtype` (pass jnp.bfloat16 to halve output HBM traffic).
    tile_b: batch tile; 8192 default, sweep 4096/8192/16384 (keep <=16384 on v7x).
    """
    (w1, b1), (w2, b2), (w3, b3), (w4, b4) = params
    f, b = x_fm.shape
    assert f == IN_DIM, f

    bp = _round_up(b, LANE)                                  # pad only to a lane boundary
    x_fm = x_fm.astype(jnp.bfloat16)
    if bp != b:
        x_fm = jnp.pad(x_fm, ((0, 0), (0, bp - b)))

    tb = _pick_tile(bp, tile_b)
    grid = (pl.cdiv(bp, tb),)                                # ragged last block is fine

    def _resident(arr):
        # Whole-array block, same block every step -> stays resident in VMEM.
        return pl.BlockSpec(arr.shape, lambda i: (0, 0))

    out_fm = pl.pallas_call(
        _mlp_kernel,
        out_shape=jax.ShapeDtypeStruct((OUT_DIM, bp), out_dtype),
        grid=grid,
        in_specs=[
            pl.BlockSpec((IN_DIM, tb), lambda i: (0, i)),    # streamed x tile
            _resident(w1), _resident(b1),
            _resident(w2), _resident(b2),
            _resident(w3), _resident(b3),
            _resident(w4), _resident(b4),
        ],
        out_specs=pl.BlockSpec((OUT_DIM, tb), lambda i: (0, i)),
        compiler_params=pltpu.CompilerParams(
            dimension_semantics=("parallel",),               # megacore-shard the batch grid on v7x
            vmem_limit_bytes=32 * 1024 * 1024,               # safe on v7x (64 MiB phys) and below
        ),
    )(x_fm, w1, b1, w2, b2, w3, b3, w4, b4)

    return out_fm[:, :b]


def reference_forward(x, params):
    """Pure-JAX path with the same bf16-matmul / f32-accumulate numerics as the kernel.

    Used both as the correctness reference and as the small-batch fast path.
    """
    h = x.T.astype(jnp.bfloat16)                             # (7, B)
    n = len(params)
    for i, (w_t, bias) in enumerate(params):
        z = jnp.dot(w_t, h, preferred_element_type=jnp.float32) + bias
        h = jnp.maximum(z, 0.0).astype(jnp.bfloat16) if i < n - 1 else z
    return h.T                                               # (B, 3) f32


def second_net_forward(x, params, tile_b=8192, small_batch_threshold=1024):
    """PyTorch-contract wrapper: x (B, 7) float -> (B, 3) float32.

    Small batches (deployment B~8: ~18 KFLOP total) bypass pallas_call entirely; the
    launch + 128-lane padding would dominate and XLA fusion is strictly faster there.
    Large-batch callers should prefer `second_net_forward_fm` with feature-major data
    to avoid the two (B,7)<->(7,B) HBM transpose passes kept here for compatibility.
    """
    b = x.shape[0]
    if b < small_batch_threshold:
        return reference_forward(x, params)
    return second_net_forward_fm(x.T, params, tile_b=tile_b).T


def init_params(key):
    """Deterministic init mimicking PyTorch nn.Linear default (Kaiming-uniform).

    Weights stored transposed (out_features, in_features) in bf16 for the MXU fast path;
    biases stored (out_features, 1) in f32.
    """
    dims = [(IN_DIM, H1), (H1, H2), (H2, H3), (H3, OUT_DIM)]
    params = []
    for fan_in, fan_out in dims:
        key, wk, bk = jax.random.split(key, 3)
        bound = 1.0 / math.sqrt(fan_in)
        w_t = jax.random.uniform(wk, (fan_out, fan_in), jnp.float32, -bound, bound)
        bias = jax.random.uniform(bk, (fan_out, 1), jnp.float32, -bound, bound)
        params.append((w_t.astype(jnp.bfloat16), bias))
    return params


if __name__ == "__main__":
    key = jax.random.PRNGKey(0)
    pkey, xkey, xkey2 = jax.random.split(key, 3)

    params = init_params(pkey)

    # Deployment-scale batch (B=8): exercise the Pallas kernel via the preferred
    # feature-major entry point, and also check the auto wrapper (fast path).
    B = 8
    x = jax.random.normal(xkey, (B, IN_DIM), jnp.float32)
    ref = reference_forward(x, params)

    out_fm = jax.block_until_ready(second_net_forward_fm(x.T, params))
    assert out_fm.shape == (OUT_DIM, B), out_fm.shape
    assert jnp.allclose(out_fm.T, ref, atol=5e-3, rtol=5e-3), "fm kernel mismatch vs reference"

    out_wrap = jax.block_until_ready(second_net_forward(x, params))
    assert out_wrap.shape == (B, OUT_DIM), out_wrap.shape
    assert jnp.allclose(out_wrap, ref, atol=5e-3, rtol=5e-3), "wrapper mismatch vs reference"

    # Non-multiple-of-128 batch: exercises 128-lane padding, the >=2-step
    # (megacore-shardable) grid and the ragged last block.
    B2 = 300
    x2 = jax.random.normal(xkey2, (B2, IN_DIM), jnp.float32)
    out2 = jax.block_until_ready(second_net_forward_fm(x2.T, params))
    ref2 = reference_forward(x2, params)
    assert out2.shape == (OUT_DIM, B2), out2.shape
    assert jnp.allclose(out2.T, ref2, atol=5e-3, rtol=5e-3), "ragged-grid kernel mismatch"

    print("KERNEL_OK")
</pallas_src>

<mosaic_0001>
module attributes {stable_mosaic.version = 11 : i64} {
  func.func @_mlp_kernel(%arg0: i32, %arg1: memref<7x128xbf16, #tpu.memory_space<vmem>>, %arg2: memref<25x7xbf16, #tpu.memory_space<vmem>>, %arg3: memref<25x1xf32, #tpu.memory_space<vmem>>, %arg4: memref<25x25xbf16, #tpu.memory_space<vmem>>, %arg5: memref<25x1xf32, #tpu.memory_space<vmem>>, %arg6: memref<10x25xbf16, #tpu.memory_space<vmem>>, %arg7: memref<10x1xf32, #tpu.memory_space<vmem>>, %arg8: memref<3x10xbf16, #tpu.memory_space<vmem>>, %arg9: memref<3x1xf32, #tpu.memory_space<vmem>>, %arg10: memref<3x128xf32, #tpu.memory_space<vmem>>) attributes {dimension_semantics = [#tpu.dimension_semantics<parallel>], iteration_bounds = array<i64: 1>, scalar_prefetch = 0 : i64, scratch_operands = 0 : i64, tpu.core_type = #tpu.core_type<tc>, window_params = [{transform_indices = @transform_0, window_bounds = array<i64: 7, 128>}, {pipeline_mode = #tpu.pipeline_mode<synchronous>, transform_indices = @transform_1, window_bounds = array<i64: 25, 7>}, {pipeline_mode = #tpu.pipeline_mode<synchronous>, transform_indices = @transform_2, window_bounds = array<i64: 25, 1>}, {pipeline_mode = #tpu.pipeline_mode<synchronous>, transform_indices = @transform_3, window_bounds = array<i64: 25, 25>}, {pipeline_mode = #tpu.pipeline_mode<synchronous>, transform_indices = @transform_4, window_bounds = array<i64: 25, 1>}, {pipeline_mode = #tpu.pipeline_mode<synchronous>, transform_indices = @transform_5, window_bounds = array<i64: 10, 25>}, {pipeline_mode = #tpu.pipeline_mode<synchronous>, transform_indices = @transform_6, window_bounds = array<i64: 10, 1>}, {pipeline_mode = #tpu.pipeline_mode<synchronous>, transform_indices = @transform_7, window_bounds = array<i64: 3, 10>}, {pipeline_mode = #tpu.pipeline_mode<synchronous>, transform_indices = @transform_8, window_bounds = array<i64: 3, 1>}, {transform_indices = @transform_9, window_bounds = array<i64: 3, 128>}]} {
    %c0 = arith.constant 0 : index
    %c0_0 = arith.constant 0 : index
    %0 = vector.load %arg1[%c0, %c0_0] : memref<7x128xbf16, #tpu.memory_space<vmem>>, vector<7x128xbf16>
    %c0_1 = arith.constant 0 : index
    %c0_2 = arith.constant 0 : index
    %1 = vector.load %arg2[%c0_1, %c0_2] : memref<25x7xbf16, #tpu.memory_space<vmem>>, vector<25x7xbf16>
    %cst = arith.constant dense<0.000000e+00> : vector<25x128xf32>
    %2 = tpu.matmul %1, %0, %cst {dimension_numbers = #tpu.dot_dimension_numbers<[1], [0], [0], [1], [0, 0, 1, 1], [], []>} : vector<25x7xbf16>, vector<7x128xbf16>, vector<25x128xf32> -> vector<25x128xf32>
    %c0_3 = arith.constant 0 : index
    %c0_4 = arith.constant 0 : index
    %3 = vector.load %arg3[%c0_3, %c0_4] : memref<25x1xf32, #tpu.memory_space<vmem>>, vector<25x1xf32>
    %4 = vector.broadcast %3 : vector<25x1xf32> to vector<25x128xf32>
    %5 = arith.addf %2, %4 : vector<25x128xf32>
    %cst_5 = arith.constant 0.000000e+00 : f32
    %6 = vector.broadcast %cst_5 : f32 to vector<25x128xf32>
    %7 = arith.maximumf %5, %6 : vector<25x128xf32>
    %8 = arith.truncf %7 : vector<25x128xf32> to vector<25x128xbf16>
    %c0_6 = arith.constant 0 : index
    %c0_7 = arith.constant 0 : index
    %9 = vector.load %arg4[%c0_6, %c0_7] : memref<25x25xbf16, #tpu.memory_space<vmem>>, vector<25x25xbf16>
    %cst_8 = arith.constant dense<0.000000e+00> : vector<25x128xf32>
    %10 = tpu.matmul %9, %8, %cst_8 {dimension_numbers = #tpu.dot_dimension_numbers<[1], [0], [0], [1], [0, 0, 1, 1], [], []>} : vector<25x25xbf16>, vector<25x128xbf16>, vector<25x128xf32> -> vector<25x128xf32>
    %c0_9 = arith.constant 0 : index
    %c0_10 = arith.constant 0 : index
    %11 = vector.load %arg5[%c0_9, %c0_10] : memref<25x1xf32, #tpu.memory_space<vmem>>, vector<25x1xf32>
    %12 = vector.broadcast %11 : vector<25x1xf32> to vector<25x128xf32>
    %13 = arith.addf %10, %12 : vector<25x128xf32>
    %cst_11 = arith.constant 0.000000e+00 : f32
    %14 = vector.broadcast %cst_11 : f32 to vector<25x128xf32>
    %15 = arith.maximumf %13, %14 : vector<25x128xf32>
    %16 = arith.truncf %15 : vector<25x128xf32> to vector<25x128xbf16>
    %c0_12 = arith.constant 0 : index
    %c0_13 = arith.constant 0 : index
    %17 = vector.load %arg6[%c0_12, %c0_13] : memref<10x25xbf16, #tpu.memory_space<vmem>>, vector<10x25xbf16>
    %cst_14 = arith.constant dense<0.000000e+00> : vector<10x128xf32>
    %18 = tpu.matmul %17, %16, %cst_14 {dimension_numbers = #tpu.dot_dimension_numbers<[1], [0], [0], [1], [0, 0, 1, 1], [], []>} : vector<10x25xbf16>, vector<25x128xbf16>, vector<10x128xf32> -> vector<10x128xf32>
    %c0_15 = arith.constant 0 : index
    %c0_16 = arith.constant 0 : index
    %19 = vector.load %arg7[%c0_15, %c0_16] : memref<10x1xf32, #tpu.memory_space<vmem>>, vector<10x1xf32>
    %20 = vector.broadcast %19 : vector<10x1xf32> to vector<10x128xf32>
    %21 = arith.addf %18, %20 : vector<10x128xf32>
    %cst_17 = arith.constant 0.000000e+00 : f32
    %22 = vector.broadcast %cst_17 : f32 to vector<10x128xf32>
    %23 = arith.maximumf %21, %22 : vector<10x128xf32>
    %24 = arith.truncf %23 : vector<10x128xf32> to vector<10x128xbf16>
    %c0_18 = arith.constant 0 : index
    %c0_19 = arith.constant 0 : index
    %25 = vector.load %arg8[%c0_18, %c0_19] : memref<3x10xbf16, #tpu.memory_space<vmem>>, vector<3x10xbf16>
    %cst_20 = arith.constant dense<0.000000e+00> : vector<3x128xf32>
    %26 = tpu.matmul %25, %24, %cst_20 {dimension_numbers = #tpu.dot_dimension_numbers<[1], [0], [0], [1], [0, 0, 1, 1], [], []>} : vector<3x10xbf16>, vector<10x128xbf16>, vector<3x128xf32> -> vector<3x128xf32>
    %c0_21 = arith.constant 0 : index
    %c0_22 = arith.constant 0 : index
    %27 = vector.load %arg9[%c0_21, %c0_22] : memref<3x1xf32, #tpu.memory_space<vmem>>, vector<3x1xf32>
    %28 = vector.broadcast %27 : vector<3x1xf32> to vector<3x128xf32>
    %29 = arith.addf %26, %28 : vector<3x128xf32>
    %c0_23 = arith.constant 0 : index
    %c0_24 = arith.constant 0 : index
    %30 = vector.load %arg10[%c0_23, %c0_24] : memref<3x128xf32, #tpu.memory_space<vmem>>, vector<3x128xf32>
    tpu.vector_store %arg10[%c0_23, %c0_24], %29 {strides = array<i32>} : memref<3x128xf32, #tpu.memory_space<vmem>>, vector<3x128xf32>,
    return
  }
  func.func @transform_0(%arg0: i32) -> (i32, i32) {
    %c0_i32 = arith.constant 0 : i32
    %c0_i32_0 = arith.constant 0 : i32
    return %c0_i32, %arg0 : i32, i32
  }
  func.func @transform_1(%arg0: i32) -> (i32, i32) {
    %c0_i32 = arith.constant 0 : i32
    %c0_i32_0 = arith.constant 0 : i32
    %c0_i32_1 = arith.constant 0 : i32
    return %c0_i32, %c0_i32_0 : i32, i32
  }
  func.func @transform_2(%arg0: i32) -> (i32, i32) {
    %c0_i32 = arith.constant 0 : i32
    %c0_i32_0 = arith.constant 0 : i32
    %c0_i32_1 = arith.constant 0 : i32
    return %c0_i32, %c0_i32_0 : i32, i32
  }
  func.func @transform_3(%arg0: i32) -> (i32, i32) {
    %c0_i32 = arith.constant 0 : i32
    %c0_i32_0 = arith.constant 0 : i32
    %c0_i32_1 = arith.constant 0 : i32
    return %c0_i32, %c0_i32_0 : i32, i32
  }
  func.func @transform_4(%arg0: i32) -> (i32, i32) {
    %c0_i32 = arith.constant 0 : i32
    %c0_i32_0 = arith.constant 0 : i32
    %c0_i32_1 = arith.constant 0 : i32
    return %c0_i32, %c0_i32_0 : i32, i32
  }
  func.func @transform_5(%arg0: i32) -> (i32, i32) {
    %c0_i32 = arith.constant 0 : i32
    %c0_i32_0 = arith.constant 0 : i32
    %c0_i32_1 = arith.constant 0 : i32
    return %c0_i32, %c0_i32_0 : i32, i32
  }
  func.func @transform_6(%arg0: i32) -> (i32, i32) {
    %c0_i32 = arith.constant 0 : i32
    %c0_i32_0 = arith.constant 0 : i32
    %c0_i32_1 = arith.constant 0 : i32
    return %c0_i32, %c0_i32_0 : i32, i32
  }
  func.func @transform_7(%arg0: i32) -> (i32, i32) {
    %c0_i32 = arith.constant 0 : i32
    %c0_i32_0 = arith.constant 0 : i32
    %c0_i32_1 = arith.constant 0 : i32
    return %c0_i32, %c0_i32_0 : i32, i32
  }
  func.func @transform_8(%arg0: i32) -> (i32, i32) {
    %c0_i32 = arith.constant 0 : i32
    %c0_i32_0 = arith.constant 0 : i32
    %c0_i32_1 = arith.constant 0 : i32
    return %c0_i32, %c0_i32_0 : i32, i32
  }
  func.func @transform_9(%arg0: i32) -> (i32, i32) {
    %c0_i32 = arith.constant 0 : i32
    %c0_i32_0 = arith.constant 0 : i32
    return %c0_i32, %arg0 : i32, i32
  }
}

</mosaic_0001>

<llo_original>
// kernel: second_net_forward_fm.1
$region0: #{second_net_forward_fm.1}
  #allocation0 [shape = 'u32[]', space=smem, size = 0x4, offset = 0x4, fixed_abs, tag = 'smem constant byte address 0x4 - core index']
  #allocation1 [shape = 'u32[144,128]{1,0:T(1,128)}', space=vmem, size = 0x12000, scoped, tag = 'internal scratch']
  %s0 = inlined_call_operand.vmem [shape: bf16[7,128], index: 0, kind: input, shape index: {}]
  %s1 = inlined_call_operand.vmem [shape: bf16[25,7], index: 1, kind: input, shape index: {}]
  %s2 = inlined_call_operand.vmem [shape: f32[25,1], index: 2, kind: input, shape index: {}]
  %s3 = inlined_call_operand.vmem [shape: bf16[25,25], index: 3, kind: input, shape index: {}]
  %s4 = inlined_call_operand.vmem [shape: f32[25,1], index: 4, kind: input, shape index: {}]
  %s5 = inlined_call_operand.vmem [shape: bf16[10,25], index: 5, kind: input, shape index: {}]
  %s6 = inlined_call_operand.vmem [shape: f32[10,1], index: 6, kind: input, shape index: {}]
  %s7 = inlined_call_operand.vmem [shape: bf16[3,10], index: 7, kind: input, shape index: {}]
  %s8 = inlined_call_operand.vmem [shape: f32[3,1], index: 8, kind: input, shape index: {}]
  %s9 = inlined_call_operand.hbm [shape: f32[3,128], index: 9, kind: output, shape index: {}]
  %s10 = sld [smem:[#allocation0]]
  $region46: #{second_net_forward_fm.1} parent=0
    _
  %s12 = ssub.s32 1, %s10
  %s13 = scalar_select 0, %s12, %s10
  $region1: #{second_net_forward_fm.1} parent=0
    #allocation2 [shape = 'u8[2048]{0}', space=vmem, size = 0x800, scoped, tag = 'output window, operand 0, single buffered']
    #allocation3 [shape = 's32[1]{0}', space=sflag, size = 0x4, scoped, tag = 'scoped memory for second_net_forward_fm.1']
    %14 = vsyncpa [#allocation3], 0
    // Predicated region
    $region2: #{second_net_forward_fm.1} parent=1 // pred_check
      _
    $region3: #{second_net_forward_fm.1} parent=1 // pred_check_branch
      %16 = sbr.rel (0) target = $region5
    $region4: #{second_net_forward_fm.1} parent=1 // pred_region
      _
    $region5: #{second_net_forward_fm.1} parent=1 // pred_fallthru
      _
    // Predicated region
    $region6: #{second_net_forward_fm.1} parent=1 // pred_check
      _
    $region7: #{second_net_forward_fm.1} parent=1 // pred_check_branch
      %18 = sbr.rel (0) target = $region9
    $region8: #{second_net_forward_fm.1} parent=1 // pred_region
      _
    $region9: #{second_net_forward_fm.1} parent=1 // pred_fallthru
      _
    // Predicated region
    $region10: #{second_net_forward_fm.1} parent=1 // pred_check
      _
    $region11: #{second_net_forward_fm.1} parent=1 // pred_check_branch
      %20 = sbr.rel (0) target = $region13
    $region12: #{second_net_forward_fm.1} parent=1 // pred_region
      _
    $region13: #{second_net_forward_fm.1} parent=1 // pred_fallthru
      _
    // Predicated region
    $region14: #{second_net_forward_fm.1} parent=1 // pred_check
      _
    $region15: #{second_net_forward_fm.1} parent=1 // pred_check_branch
      %22 = sbr.rel (0) target = $region17
    $region16: #{second_net_forward_fm.1} parent=1 // pred_region
      _
    $region17: #{second_net_forward_fm.1} parent=1 // pred_fallthru
      _
    // Predicated region
    $region18: #{second_net_forward_fm.1} parent=1 // pred_check
      _
    $region19: #{second_net_forward_fm.1} parent=1 // pred_check_branch
      %24 = sbr.rel (0) target = $region21
    $region20: #{second_net_forward_fm.1} parent=1 // pred_region
      _
    $region21: #{second_net_forward_fm.1} parent=1 // pred_fallthru
      _
    // Predicated region
    $region22: #{second_net_forward_fm.1} parent=1 // pred_check
      _
    $region23: #{second_net_forward_fm.1} parent=1 // pred_check_branch
      %26 = sbr.rel (0) target = $region25
    $region24: #{second_net_forward_fm.1} parent=1 // pred_region
      _
    $region25: #{second_net_forward_fm.1} parent=1 // pred_fallthru
      _
    // Predicated region
    $region26: #{second_net_forward_fm.1} parent=1 // pred_check
      _
    $region27: #{second_net_forward_fm.1} parent=1 // pred_check_branch
      %28 = sbr.rel (0) target = $region29
    $region28: #{second_net_forward_fm.1} parent=1 // pred_region
      _
    $region29: #{second_net_forward_fm.1} parent=1 // pred_fallthru
      _
    // Predicated region
    $region30: #{second_net_forward_fm.1} parent=1 // pred_check
      _
    $region31: #{second_net_forward_fm.1} parent=1 // pred_check_branch
      %30 = sbr.rel (0) target = $region33
    $region32: #{second_net_forward_fm.1} parent=1 // pred_region
      _
    $region33: #{second_net_forward_fm.1} parent=1 // pred_fallthru
      _
    // Predicated region
    $region34: #{second_net_forward_fm.1} parent=1 // pred_check
      _
    $region35: #{second_net_forward_fm.1} parent=1 // pred_check_branch
      %32 = sbr.rel (0) target = $region37
    $region36: #{second_net_forward_fm.1} parent=1 // pred_region
      _
    $region37: #{second_net_forward_fm.1} parent=1 // pred_fallthru
      _
    %v34 = vld [vmem:[%s0] sm:$0xf]
    %v35 = vld [vmem:[%s1] sm:$0xf]
    %v36 = vld [vmem:[%s1 + $0x4] sm:$0xf]
    %v37 = vld [vmem:[%s1 + $0x8] sm:$0xf]
    %v38 = vld [vmem:[%s1 + $0xc] sm:$0x1]
    %v39 = vld [vmem:[%s2] sm:$0xff]
    %v40 = vld [vmem:[%s2 + $0x8] sm:$0xff]
    %v41 = vld [vmem:[%s2 + $0x10] sm:$0xff]
    %v42 = vld [vmem:[%s2 + $0x18] sm:$0x1]
    %44 = vset.pattern.permute.xlu0 0
    %45 = vperm.xlu0 %44, %v39
    %v46 = vpop.permute.xlu0 %45
    %49 = vset.pattern.permute.xlu0 0
    %50 = vperm.xlu0 %49, %v40
    %v51 = vpop.permute.xlu0 %50
    %54 = vset.pattern.permute.xlu0 0
    %55 = vperm.xlu0 %54, %v41
    %v56 = vpop.permute.xlu0 %55
    %59 = vset.pattern.permute.xlu0 0
    %60 = vperm.xlu0 %59, %v42
    %v61 = vpop.permute.xlu0 %60
    %v67 = vunpack.c.l.b16 %v35
    %v68 = vunpack.c.l.b16 %v36
    %v69 = vunpack.c.l.b16 %v37
    %v70 = vunpack.c.l.b16 %v38
    %v71 = vpack.c.b16 %v68, %v67
    %v72 = vpack.c.b16 %v70, %v69
    %vm73 = vcmask 56320
    %v75 = vsel %vm73, %v71, 0
    %v78 = vsel %vm73, %v72, 0
    %vm80 = vcmask 1042432
    %vm81 = vcmask 1043456
    %v82 = vsel %vm80, 4294967295, 65535
    %v83 = vsel %vm81, %v82, 0
    %v85 = vand.u32 %v34, %v83
    %87 = vmatprep.subr.bf16.mxu0 0
    %88 = vmatpush1.bf16.msra.mxu0 0
    %89 = vmatprep.subr.bf16.mxu0 0
    %90 = vmatpush1.bf16.msra.mxu0 0
    %91 = vmatprep.subr.bf16.mxu0 0
    %92 = vmatpush1.bf16.msra.mxu0 0
    %93 = vmatprep.subr.bf16.mxu0 0
    %94 = vmatpush1.bf16.msra.mxu0 0
    %95 = vmatprep.subr.bf16.mxu0 0
    %96 = vmatpush1.bf16.msra.mxu0 0
    %97 = vmatprep.subr.bf16.mxu0 0
    %98 = vmatpush1.bf16.msra.mxu0 0
    %99 = vmatprep.subr.bf16.mxu0 0
    %100 = vmatpush1.bf16.msra.mxu0 0
    %101 = vmatprep.subr.bf16.mxu0 0
    %102 = vmatpush1.bf16.msra.mxu0 %v85
    %103 = vmatprep.subr.bf16.mxu0 0
    %104 = vmatpush2.bf16.msra.mxu0 0
    %105 = vmatprep.subr.bf16.mxu0 0
    %106 = vmatpush2.bf16.msra.mxu0 0
    %107 = vmatprep.subr.bf16.mxu0 0
    %108 = vmatpush2.bf16.msra.mxu0 0
    %109 = vmatprep.subr.bf16.mxu0 0
    %110 = vmatpush2.bf16.msra.mxu0 0
    %111 = vmatprep.subr.bf16.mxu0 0
    %112 = vmatpush2.bf16.msra.mxu0 0
    %113 = vmatprep.subr.bf16.mxu0 0
    %114 = vmatpush2.bf16.msra.mxu0 0
    %115 = vmatprep.subr.bf16.mxu0 0
    %116 = vmatpush2.bf16.msra.mxu0 0
    %117 = vmatprep.subr.bf16.mxu0 0
    %118 = vmatpush2.bf16.msra.mxu0 0
    %119 = vmatprep.mubr.bf16.mxu0 0
    %120 = vmatmul.mubr.bf16.gmra.mxu0 %v75
    %v121 = vpop.f32.mrf.mxu0
    %v122 = vadd.f32 %v46, %v121
    %v123 = vpop.f32.mrf.mxu0
    %v124 = vpop.f32.mrf.mxu0
    %v125 = vadd.f32 %v51, %v124
    %v126 = vpop.f32.mrf.mxu0
    %127 = vmatprep.mubr.bf16.mxu0 0
    %128 = vmatmul.mubr.bf16.gmra.mxu0 %v78
    %v129 = vpop.f32.mrf.mxu0
    %v130 = vadd.f32 %v56, %v129
    %v131 = vpop.f32.mrf.mxu0
    %v132 = vpop.f32.mrf.mxu0
    %v133 = vadd.f32 %v61, %v132
    %v134 = vpop.f32.mrf.mxu0
    %135 = vdwg.mxu0
    %v136 = vmax.f32 %v122, 0.0
    %v137 = vmax.f32 %v125, 0.0
    %v138 = vmax.f32 %v130, 0.0
    %v139 = vmax.f32 %v133, 0.0
    %v140 = vpack.c.bf16 %v137, %v136
    %v141 = vpack.c.bf16 %v139, %v138
    %v142 = vld [vmem:[%s3] sm:$0xf]
    %v143 = vld [vmem:[%s3 + $0x4] sm:$0xf]
    %v144 = vld [vmem:[%s3 + $0x8] sm:$0xf]
    %v145 = vld [vmem:[%s3 + $0xc] sm:$0x1]
    %v146 = vld [vmem:[%s4] sm:$0xff]
    %v147 = vld [vmem:[%s4 + $0x8] sm:$0xff]
    %v148 = vld [vmem:[%s4 + $0x10] sm:$0xff]
    %v149 = vld [vmem:[%s4 + $0x18] sm:$0x1]
    %151 = vset.pattern.permute.xlu0 0
    %152 = vperm.xlu0 %151, %v146
    %v153 = vpop.permute.xlu0 %152
    %156 = vset.pattern.permute.xlu0 0
    %157 = vperm.xlu0 %156, %v147
    %v158 = vpop.permute.xlu0 %157
    %161 = vset.pattern.permute.xlu0 0
    %162 = vperm.xlu0 %161, %v148
    %v163 = vpop.permute.xlu0 %162
    %166 = vset.pattern.permute.xlu0 0
    %167 = vperm.xlu0 %166, %v149
    %v168 = vpop.permute.xlu0 %167
    %v174 = vunpack.c.l.b16 %v142
    %v175 = vunpack.c.l.b16 %v143
    %v176 = vunpack.c.l.b16 %v144
    %v177 = vunpack.c.l.b16 %v145
    %v178 = vpack.c.b16 %v175, %v174
    %v179 = vpack.c.b16 %v177, %v176
    %vm180 = vcmask 203776
    %v182 = vsel %vm180, %v178, 0
    %v185 = vsel %vm180, %v179, 0
    %vm187 = vcmask 1044480
    %v188 = vsel %vm81, 4294967295, 65535
    %v189 = vsel %vm187, %v188, 0
    %v191 = vand.u32 %v141, %v189
    %193 = vmatprep.subr.bf16.mxu0 0
    %194 = vmatpush1.bf16.msra.mxu0 0
    %195 = vmatprep.subr.bf16.mxu0 0
    %196 = vmatpush1.bf16.msra.mxu0 0
    %197 = vmatprep.subr.bf16.mxu0 0
    %198 = vmatpush1.bf16.msra.mxu0 0
    %199 = vmatprep.subr.bf16.mxu0 0
    %200 = vmatpush1.bf16.msra.mxu0 0
    %201 = vmatprep.subr.bf16.mxu0 0
    %202 = vmatpush1.bf16.msra.mxu0 0
    %203 = vmatprep.subr.bf16.mxu0 0
    %204 = vmatpush1.bf16.msra.mxu0 0
    %205 = vmatprep.subr.bf16.mxu0 0
    %206 = vmatpush1.bf16.msra.mxu0 %v191
    %207 = vmatprep.subr.bf16.mxu0 0
    %208 = vmatpush1.bf16.msra.mxu0 %v140
    %209 = vmatprep.subr.bf16.mxu0 0
    %210 = vmatpush2.bf16.msra.mxu0 0
    %211 = vmatprep.subr.bf16.mxu0 0
    %212 = vmatpush2.bf16.msra.mxu0 0
    %213 = vmatprep.subr.bf16.mxu0 0
    %214 = vmatpush2.bf16.msra.mxu0 0
    %215 = vmatprep.subr.bf16.mxu0 0
    %216 = vmatpush2.bf16.msra.mxu0 0
    %217 = vmatprep.subr.bf16.mxu0 0
    %218 = vmatpush2.bf16.msra.mxu0 0
    %219 = vmatprep.subr.bf16.mxu0 0
    %220 = vmatpush2.bf16.msra.mxu0 0
    %221 = vmatprep.subr.bf16.mxu0 0
    %222 = vmatpush2.bf16.msra.mxu0 0
    %223 = vmatprep.subr.bf16.mxu0 0
    %224 = vmatpush2.bf16.msra.mxu0 0
    %225 = vmatprep.mubr.bf16.mxu0 0
    %226 = vmatmul.mubr.bf16.gmra.mxu0 %v182
    %v227 = vpop.f32.mrf.mxu0
    %v228 = vadd.f32 %v153, %v227
    %v229 = vpop.f32.mrf.mxu0
    %v230 = vpop.f32.mrf.mxu0
    %v231 = vadd.f32 %v158, %v230
    %v232 = vpop.f32.mrf.mxu0
    %233 = vmatprep.mubr.bf16.mxu0 0
    %234 = vmatmul.mubr.bf16.gmra.mxu0 %v185
    %v235 = vpop.f32.mrf.mxu0
    %v236 = vadd.f32 %v163, %v235
    %v237 = vpop.f32.mrf.mxu0
    %v238 = vpop.f32.mrf.mxu0
    %v239 = vadd.f32 %v168, %v238
    %v240 = vpop.f32.mrf.mxu0
    %241 = vdwg.mxu0
    %v242 = vmax.f32 %v228, 0.0
    %v243 = vmax.f32 %v231, 0.0
    %v244 = vmax.f32 %v236, 0.0
    %v245 = vmax.f32 %v239, 0.0
    %v246 = vpack.c.bf16 %v243, %v242
    %v247 = vpack.c.bf16 %v245, %v244
    %v248 = vld [vmem:[%s5] sm:$0xf]
    %v249 = vld [vmem:[%s5 + $0x4] sm:$0x1]
    %v250 = vld [vmem:[%s6] sm:$0xff]
    %v251 = vld [vmem:[%s6 + $0x8] sm:$0x3]
    %253 = vset.pattern.permute.xlu0 0
    %254 = vperm.xlu0 %253, %v250
    %v255 = vpop.permute.xlu0 %254
    %258 = vset.pattern.permute.xlu0 0
    %259 = vperm.xlu0 %258, %v251
    %v260 = vpop.permute.xlu0 %259
    %v264 = vunpack.c.l.b16 %v248
    %v265 = vunpack.c.l.b16 %v249
    %v266 = vpack.c.b16 %v265, %v264
    %v268 = vsel %vm180, %v266, 0
    %v271 = vand.u32 %v247, %v189
    %273 = vmatprep.subr.bf16.mxu0 0
    %274 = vmatpush1.bf16.msra.mxu0 0
    %275 = vmatprep.subr.bf16.mxu0 0
    %276 = vmatpush1.bf16.msra.mxu0 0
    %277 = vmatprep.subr.bf16.mxu0 0
    %278 = vmatpush1.bf16.msra.mxu0 0
    %279 = vmatprep.subr.bf16.mxu0 0
    %280 = vmatpush1.bf16.msra.mxu0 0
    %281 = vmatprep.subr.bf16.mxu0 0
    %282 = vmatpush1.bf16.msra.mxu0 0
    %283 = vmatprep.subr.bf16.mxu0 0
    %284 = vmatpush1.bf16.msra.mxu0 0
    %285 = vmatprep.subr.bf16.mxu0 0
    %286 = vmatpush1.bf16.msra.mxu0 %v271
    %287 = vmatprep.subr.bf16.mxu0 0
    %288 = vmatpush1.bf16.msra.mxu0 %v246
    %289 = vmatprep.subr.bf16.mxu0 0
    %290 = vmatpush2.bf16.msra.mxu0 0
    %291 = vmatprep.subr.bf16.mxu0 0
    %292 = vmatpush2.bf16.msra.mxu0 0
    %293 = vmatprep.subr.bf16.mxu0 0
    %294 = vmatpush2.bf16.msra.mxu0 0
    %295 = vmatprep.subr.bf16.mxu0 0
    %296 = vmatpush2.bf16.msra.mxu0 0
    %297 = vmatprep.subr.bf16.mxu0 0
    %298 = vmatpush2.bf16.msra.mxu0 0
    %299 = vmatprep.subr.bf16.mxu0 0
    %300 = vmatpush2.bf16.msra.mxu0 0
    %301 = vmatprep.subr.bf16.mxu0 0
    %302 = vmatpush2.bf16.msra.mxu0 0
    %303 = vmatprep.subr.bf16.mxu0 0
    %304 = vmatpush2.bf16.msra.mxu0 0
    %305 = vmatprep.mubr.bf16.mxu0 0
    %306 = vmatmul.mubr.bf16.gmra.mxu0 %v268
    %v307 = vpop.f32.mrf.mxu0
    %v308 = vadd.f32 %v255, %v307
    %v309 = vpop.f32.mrf.mxu0
    %v310 = vpop.f32.mrf.mxu0
    %v311 = vadd.f32 %v260, %v310
    %v312 = vpop.f32.mrf.mxu0
    %313 = vdwg.mxu0
    %v314 = vmax.f32 %v308, 0.0
    %v315 = vmax.f32 %v311, 0.0
    %v316 = vpack.c.bf16 %v315, %v314
    %v317 = vld [vmem:[%s7] sm:$0x3]
    %v318 = vld [vmem:[%s8] sm:$0x7]
    %320 = vset.pattern.permute.xlu0 0
    %321 = vperm.xlu0 %320, %v318
    %v322 = vpop.permute.xlu0 %321
    %vm324 = vcmask 80896
    %v326 = vsel %vm324, %v317, 0
    %v329 = vsel %vm187, %v316, 0
    %331 = vmatprep.subr.bf16.mxu0 0
    %332 = vmatpush1.bf16.msra.mxu0 0
    %333 = vmatprep.subr.bf16.mxu0 0
    %334 = vmatpush1.bf16.msra.mxu0 0
    %335 = vmatprep.subr.bf16.mxu0 0
    %336 = vmatpush1.bf16.msra.mxu0 0
    %337 = vmatprep.subr.bf16.mxu0 0
    %338 = vmatpush1.bf16.msra.mxu0 0
    %339 = vmatprep.subr.bf16.mxu0 0
    %340 = vmatpush1.bf16.msra.mxu0 0
    %341 = vmatprep.subr.bf16.mxu0 0
    %342 = vmatpush1.bf16.msra.mxu0 0
    %343 = vmatprep.subr.bf16.mxu0 0
    %344 = vmatpush1.bf16.msra.mxu0 0
    %345 = vmatprep.subr.bf16.mxu0 0
    %346 = vmatpush1.bf16.msra.mxu0 %v329
    %347 = vmatprep.subr.bf16.mxu0 0
    %348 = vmatpush2.bf16.msra.mxu0 0
    %349 = vmatprep.subr.bf16.mxu0 0
    %350 = vmatpush2.bf16.msra.mxu0 0
    %351 = vmatprep.subr.bf16.mxu0 0
    %352 = vmatpush2.bf16.msra.mxu0 0
    %353 = vmatprep.subr.bf16.mxu0 0
    %354 = vmatpush2.bf16.msra.mxu0 0
    %355 = vmatprep.subr.bf16.mxu0 0
    %356 = vmatpush2.bf16.msra.mxu0 0
    %357 = vmatprep.subr.bf16.mxu0 0
    %358 = vmatpush2.bf16.msra.mxu0 0
    %359 = vmatprep.subr.bf16.mxu0 0
    %360 = vmatpush2.bf16.msra.mxu0 0
    %361 = vmatprep.subr.bf16.mxu0 0
    %362 = vmatpush2.bf16.msra.mxu0 0
    %363 = vmatprep.mubr.bf16.mxu0 0
    %364 = vmatmul.mubr.bf16.gmra.mxu0 %v326
    %v365 = vpop.f32.mrf.mxu0
    %v366 = vadd.f32 %v322, %v365
    %v367 = vpop.f32.mrf.mxu0
    %v368 = vpop.f32.mrf.mxu0
    %v369 = vpop.f32.mrf.mxu0
    %370 = vdwg.mxu0
    %371 = vst [vmem:[#allocation2] sm:$0x7] %v366
    // Predicated region
    $region38: #{second_net_forward_fm.1} parent=1 // pred_check
      _
    $region39: #{second_net_forward_fm.1} parent=1 // pred_check_branch
      %373 = sbr.rel (0) target = $region41
    $region40: #{second_net_forward_fm.1} parent=1 // pred_region
      %s375 = ssub.s32 64, 64
      %376 = vsyncadd [#allocation3], %s375
      %s378 = sshll.u32 [#allocation2], 4
      %s379 = int_to_ptr.vmem [resolvable:$true] %s378
      %381 = dma.vmem_to_hbm [thread:$0]  %s379, 64, %s9, [#allocation3]
    $region41: #{second_net_forward_fm.1} parent=1 // pred_fallthru
      _
    // Predicated region
    $region42: #{second_net_forward_fm.1} parent=1 // pred_check
      _
    $region43: #{second_net_forward_fm.1} parent=1 // pred_check_branch
      %383 = sbr.rel (0) target = $region45
    $region44: #{second_net_forward_fm.1} parent=1 // pred_region
      %384 = dma.done [#allocation3], 64
    $region45: #{second_net_forward_fm.1} parent=1 // pred_fallthru
      _
    %385 = vsyncpa [#allocation3], 1

</llo_original>
